<compile_context>
chip_gen: v6e
topology: v6e:2x2x1
jax: 0.10.0
libtpu: 0.0.40
codegen_flags: <defaults>
</compile_context>

<pallas_src>
import functools

import jax
import jax.numpy as jnp
import numpy as np
from jax.experimental import pallas as pl
from jax.experimental.pallas import tpu as pltpu

_LANE = 128
_SUBLANE = 8
_VMEM_LIMIT = 32 * 1024 * 1024   # sized against v7x's smaller scoped VMEM


def _round_up(n, m):
    return ((n + m - 1) // m) * m


def _pad_to(a, axis, target):
    if a.shape[axis] == target:
        return a
    pads = [(0, 0)] * a.ndim
    pads[axis] = (0, target - a.shape[axis])
    return jnp.pad(a, pads)


def _pick_tile_hw(hw):
    """Largest of {512, 256, 128} whose zero-pad overhead stays <= hw/8."""
    for t in (512, 256):
        if ((-hw) % t) * 8 <= hw:
            return t
    return 128


def _im2col_3x3(x_nhwc):
    """Plain-JAX glue: 3x3 same-padding patches -> (B, H*W, 9*Cin)."""
    B, H, W, C = x_nhwc.shape
    xp = jnp.pad(x_nhwc, ((0, 0), (1, 1), (1, 1), (0, 0)))
    cols = [xp[:, ky:ky + H, kx:kx + W, :] for ky in range(3) for kx in range(3)]
    return jnp.concatenate(cols, axis=-1).reshape(B, H * W, 9 * C)


def _conv_relu_gap_kernel(patches_ref, w_ref, b_ref, out_ref, *, hw, tile_hw):
    """One (batch, hw-tile) step of conv-as-matmul + ReLU + global-average-pool.

    patches: (1, TILE_HW, Kpad) bf16   w: (Kpad, Cpad) bf16   b: (1, Cpad) f32
    out:     (1, 1, Cpad) f32 — resident accumulator across the hw-tile axis.
    """
    t = pl.program_id(1)

    @pl.when(t == 0)
    def _init():
        out_ref[...] = jnp.zeros_like(out_ref)

    y = jnp.dot(patches_ref[0], w_ref[...], preferred_element_type=jnp.float32)
    y = jnp.maximum(y + b_ref[...], 0.0)                           # bias + ReLU (f32, VPU)
    if hw % tile_hw != 0:
        # Padded HW rows would otherwise contribute relu(bias) to the pool.
        row = t * tile_hw + jax.lax.broadcasted_iota(jnp.int32, y.shape, 0)
        y = jnp.where(row < hw, y, 0.0)
    out_ref[...] += jnp.sum(y, axis=0, keepdims=True)[None]        # XLU sublane reduce

    @pl.when(t == pl.num_programs(1) - 1)
    def _finalize():
        out_ref[...] = out_ref[...] * (1.0 / hw)                   # AdaptiveAvgPool2d(1)


def _embed_bn_kernel(f_ref, w_ref, b_ref, gamma_ref, beta_ref, out_ref, *, b_real, eps):
    """Linear embed (K-tiled accumulation) + BatchNorm1d with batch statistics.

    f: (Bp, TK) f32   w: (TK, Epad) f32   b/gamma/beta: (1, Epad) f32
    out: (Bp, Epad) f32 — resident across the K axis, used as the accumulator.
    """
    k = pl.program_id(0)

    @pl.when(k == 0)
    def _init():
        out_ref[...] = jnp.zeros_like(out_ref)

    out_ref[...] += jnp.dot(f_ref[...], w_ref[...], preferred_element_type=jnp.float32)

    @pl.when(k == pl.num_programs(0) - 1)
    def _finalize():
        z = out_ref[...] + b_ref[...]
        # BatchNorm1d training-mode stats over the *real* batch rows only
        # (padded sublane rows are excluded; biased variance, as in PyTorch).
        row = jax.lax.broadcasted_iota(jnp.int32, z.shape, 0)
        valid = (row < b_real).astype(jnp.float32)
        inv_b = 1.0 / b_real
        mu = jnp.sum(z * valid, axis=0, keepdims=True) * inv_b
        d = (z - mu) * valid
        var = jnp.sum(d * d, axis=0, keepdims=True) * inv_b
        yhat = (z - mu) * jax.lax.rsqrt(var + eps)                  # EUP rsqrt
        out_ref[...] = yhat * gamma_ref[...] + beta_ref[...]


def encoder_cnn_forward(images_nchw, params):
    B, Cin, H, W = images_nchw.shape
    HW = H * W

    # ---- conv stage: im2col (bf16) + lane/row padding -----------------------------
    x = jnp.transpose(images_nchw, (0, 2, 3, 1)).astype(jnp.bfloat16)  # NCHW -> NHWC
    patches = _im2col_3x3(x)                                           # (B, HW, 9*Cin)
    k_dim = patches.shape[-1]
    k_pad = _round_up(k_dim, _LANE)
    tile_hw = _pick_tile_hw(HW)
    hw_pad = _round_up(HW, tile_hw)
    patches = _pad_to(_pad_to(patches, 2, k_pad), 1, hw_pad)           # (B, HWp, Kp) bf16

    feat_dim = params["conv_w"].shape[-1]
    feat_pad = _round_up(feat_dim, _LANE)
    w_conv = params["conv_w"].reshape(k_dim, feat_dim)
    w_conv = _pad_to(_pad_to(w_conv, 0, k_pad), 1, feat_pad).astype(jnp.bfloat16)
    b_conv = _pad_to(params["conv_b"], 1, feat_pad).astype(jnp.float32)

    n_t = hw_pad // tile_hw
    feats = pl.pallas_call(
        functools.partial(_conv_relu_gap_kernel, hw=HW, tile_hw=tile_hw),
        out_shape=jax.ShapeDtypeStruct((B, 1, feat_pad), jnp.float32),
        grid=(B, n_t),
        in_specs=[
            pl.BlockSpec((1, tile_hw, k_pad), lambda b, t: (b, t, 0)),
            pl.BlockSpec((k_pad, feat_pad), lambda b, t: (0, 0)),
            pl.BlockSpec((1, feat_pad), lambda b, t: (0, 0)),
        ],
        out_specs=pl.BlockSpec((1, 1, feat_pad), lambda b, t: (b, 0, 0)),
        compiler_params=pltpu.CompilerParams(
            dimension_semantics=("parallel", "arbitrary"),
            vmem_limit_bytes=_VMEM_LIMIT,
        ),
    )(patches, w_conv, b_conv)

    # ---- Linear embed + BatchNorm1d ------------------------------------------------
    embed_size = params["embed_w"].shape[-1]
    embed_pad = _round_up(embed_size, _LANE)
    b_pad = _round_up(B, _SUBLANE)

    f = _pad_to(feats.reshape(B, feat_pad), 0, b_pad)                  # (Bp, Fp) f32
    w_emb = _pad_to(_pad_to(params["embed_w"], 0, feat_pad), 1, embed_pad).astype(jnp.float32)
    b_emb = _pad_to(params["embed_b"], 1, embed_pad).astype(jnp.float32)
    gamma = _pad_to(params["bn_gamma"], 1, embed_pad).astype(jnp.float32)
    beta = _pad_to(params["bn_beta"], 1, embed_pad).astype(jnp.float32)

    if feat_pad % 512 == 0:
        tk = 512
    elif feat_pad % 256 == 0:
        tk = 256
    else:
        tk = 128
    n_k = feat_pad // tk

    out = pl.pallas_call(
        functools.partial(_embed_bn_kernel, b_real=B, eps=1e-5),
        out_shape=jax.ShapeDtypeStruct((b_pad, embed_pad), jnp.float32),
        grid=(n_k,),
        in_specs=[
            pl.BlockSpec((b_pad, tk), lambda k: (0, k)),
            pl.BlockSpec((tk, embed_pad), lambda k: (k, 0)),
            pl.BlockSpec((1, embed_pad), lambda k: (0, 0)),
            pl.BlockSpec((1, embed_pad), lambda k: (0, 0)),
            pl.BlockSpec((1, embed_pad), lambda k: (0, 0)),
        ],
        out_specs=pl.BlockSpec((b_pad, embed_pad), lambda k: (0, 0)),
        compiler_params=pltpu.CompilerParams(
            dimension_semantics=("arbitrary",),
            vmem_limit_bytes=_VMEM_LIMIT,
        ),
    )(f, w_emb, b_emb, gamma, beta)

    return out[:B, :embed_size]


def reference_forward(images_nchw, params):
    """Pure-JAX reference (all math in f32).

    The conv-stage operands are quantized to bf16 exactly as the kernel feeds the
    MXU (that quantization is the intended mixed-precision policy), so the check
    isolates the correctness of the Pallas implementation itself.
    """
    B, Cin, H, W = images_nchw.shape
    x = jnp.transpose(images_nchw, (0, 2, 3, 1)).astype(jnp.bfloat16).astype(jnp.float32)
    patches = _im2col_3x3(x)                                           # (B, HW, 9*Cin)
    w_conv = params["conv_w"].reshape(9 * Cin, -1).astype(jnp.bfloat16).astype(jnp.float32)
    y = jnp.maximum(jnp.einsum("bpk,kf->bpf", patches, w_conv) + params["conv_b"], 0.0)
    feats = jnp.mean(y, axis=1)                                        # GAP
    z = feats @ params["embed_w"] + params["embed_b"]
    mu = jnp.mean(z, axis=0, keepdims=True)
    var = jnp.mean((z - mu) ** 2, axis=0, keepdims=True)               # biased variance
    return (z - mu) / jnp.sqrt(var + 1e-5) * params["bn_gamma"] + params["bn_beta"]


if __name__ == "__main__":
    B, Cin, H, W = 2, 4, 16, 16      # small NCHW input (images)
    feat_dim, embed_size = 32, 16    # stand-ins for resnet.fc.in_features / embed_size

    key = jax.random.PRNGKey(0)
    k = jax.random.split(key, 7)
    images = jax.random.normal(k[0], (B, Cin, H, W), dtype=jnp.float32)
    params = {
        "conv_w":   0.1 * jax.random.normal(k[1], (3, 3, Cin, feat_dim), dtype=jnp.float32),
        "conv_b":   0.1 * jax.random.normal(k[2], (1, feat_dim), dtype=jnp.float32),
        "embed_w":  0.1 * jax.random.normal(k[3], (feat_dim, embed_size), dtype=jnp.float32),
        "embed_b":  0.1 * jax.random.normal(k[4], (1, embed_size), dtype=jnp.float32),
        "bn_gamma": 1.0 + 0.1 * jax.random.normal(k[5], (1, embed_size), dtype=jnp.float32),
        "bn_beta":  0.1 * jax.random.normal(k[6], (1, embed_size), dtype=jnp.float32),
    }

    out = jax.block_until_ready(encoder_cnn_forward(images, params))
    ref = jax.block_until_ready(reference_forward(images, params))
    np.testing.assert_allclose(np.asarray(out), np.asarray(ref), rtol=2e-2, atol=2e-2)
    assert out.shape == (B, embed_size) and out.dtype == jnp.float32
    print("KERNEL_OK")
</pallas_src>

<mosaic_0001>
module attributes {stable_mosaic.version = 11 : i64} {
  func.func @_conv_relu_gap_kernel(%arg0: i32, %arg1: i32, %arg2: memref<1x256x128xbf16, #tpu.memory_space<vmem>>, %arg3: memref<128x128xbf16, #tpu.memory_space<vmem>>, %arg4: memref<1x128xf32, #tpu.memory_space<vmem>>, %arg5: memref<1x1x128xf32, #tpu.memory_space<vmem>>) attributes {dimension_semantics = [#tpu.dimension_semantics<parallel>, #tpu.dimension_semantics<arbitrary>], iteration_bounds = array<i64: 2, 1>, scalar_prefetch = 0 : i64, scratch_operands = 0 : i64, tpu.core_type = #tpu.core_type<tc>, window_params = [{transform_indices = @transform_0, window_bounds = array<i64: 1, 256, 128>}, {pipeline_mode = #tpu.pipeline_mode<synchronous>, transform_indices = @transform_1, window_bounds = array<i64: 128, 128>}, {pipeline_mode = #tpu.pipeline_mode<synchronous>, transform_indices = @transform_2, window_bounds = array<i64: 1, 128>}, {transform_indices = @transform_3, window_bounds = array<i64: 1, 1, 128>}]} {
    %c0_i32 = arith.constant 0 : i32
    %0 = arith.cmpi eq, %arg1, %c0_i32 : i32
    %1 = arith.extui %0 : i1 to i32
    %c0_i32_0 = arith.constant 0 : i32
    %2 = arith.cmpi ne, %1, %c0_i32_0 : i32
    scf.if %2 {
      %cst_17 = arith.constant 0.000000e+00 : f32
      %21 = vector.broadcast %cst_17 : f32 to vector<1x1x128xf32>
      %c0_18 = arith.constant 0 : index
      %c0_19 = arith.constant 0 : index
      %c0_20 = arith.constant 0 : index
      %22 = vector.load %arg5[%c0_18, %c0_19, %c0_20] : memref<1x1x128xf32, #tpu.memory_space<vmem>>, vector<1x1x128xf32>
      tpu.vector_store %arg5[%c0_18, %c0_19, %c0_20], %21 {strides = array<i32>} : memref<1x1x128xf32, #tpu.memory_space<vmem>>, vector<1x1x128xf32>,
    } else {
    }
    %c0 = arith.constant 0 : index
    %c0_1 = arith.constant 0 : index
    %c0_2 = arith.constant 0 : index
    %3 = vector.load %arg2[%c0, %c0_1, %c0_2] : memref<1x256x128xbf16, #tpu.memory_space<vmem>>, vector<1x256x128xbf16>
    %4 = vector.shape_cast %3 : vector<1x256x128xbf16> to vector<256x128xbf16>
    %c0_3 = arith.constant 0 : index
    %c0_4 = arith.constant 0 : index
    %5 = vector.load %arg3[%c0_3, %c0_4] : memref<128x128xbf16, #tpu.memory_space<vmem>>, vector<128x128xbf16>
    %cst = arith.constant dense<0.000000e+00> : vector<256x128xf32>
    %6 = tpu.matmul %4, %5, %cst {dimension_numbers = #tpu.dot_dimension_numbers<[1], [0], [0], [1], [0, 0, 1, 1], [], []>} : vector<256x128xbf16>, vector<128x128xbf16>, vector<256x128xf32> -> vector<256x128xf32>
    %c0_5 = arith.constant 0 : index
    %c0_6 = arith.constant 0 : index
    %7 = vector.load %arg4[%c0_5, %c0_6] : memref<1x128xf32, #tpu.memory_space<vmem>>, vector<1x128xf32>
    %8 = vector.broadcast %7 : vector<1x128xf32> to vector<256x128xf32>
    %9 = arith.addf %6, %8 : vector<256x128xf32>
    %cst_7 = arith.constant 0.000000e+00 : f32
    %10 = vector.broadcast %cst_7 : f32 to vector<256x128xf32>
    %11 = arith.maximumf %9, %10 : vector<256x128xf32>
    %c0_8 = arith.constant 0 : index
    %c0_9 = arith.constant 0 : index
    %c0_10 = arith.constant 0 : index
    %12 = vector.load %arg5[%c0_8, %c0_9, %c0_10] : memref<1x1x128xf32, #tpu.memory_space<vmem>>, vector<1x1x128xf32>
    %cst_11 = arith.constant dense<0.000000e+00> : vector<128xf32>
    %13 = vector.multi_reduction <add>, %11, %cst_11 [0] : vector<256x128xf32> to vector<128xf32>
    %14 = vector.shape_cast %13 : vector<128xf32> to vector<1x128xf32>
    %15 = vector.shape_cast %14 : vector<1x128xf32> to vector<1x1x128xf32>
    %16 = arith.addf %12, %15 : vector<1x1x128xf32>
    %c0_12 = arith.constant 0 : index
    %c0_13 = arith.constant 0 : index
    %c0_14 = arith.constant 0 : index
    %17 = vector.load %arg5[%c0_12, %c0_13, %c0_14] : memref<1x1x128xf32, #tpu.memory_space<vmem>>, vector<1x1x128xf32>
    tpu.vector_store %arg5[%c0_12, %c0_13, %c0_14], %16 {strides = array<i32>} : memref<1x1x128xf32, #tpu.memory_space<vmem>>, vector<1x1x128xf32>,
    %c0_i32_15 = arith.constant 0 : i32
    %18 = arith.cmpi eq, %arg1, %c0_i32_15 : i32
    %19 = arith.extui %18 : i1 to i32
    %c0_i32_16 = arith.constant 0 : i32
    %20 = arith.cmpi ne, %19, %c0_i32_16 : i32
    scf.if %20 {
      %c0_17 = arith.constant 0 : index
      %c0_18 = arith.constant 0 : index
      %c0_19 = arith.constant 0 : index
      %21 = vector.load %arg5[%c0_17, %c0_18, %c0_19] : memref<1x1x128xf32, #tpu.memory_space<vmem>>, vector<1x1x128xf32>
      %cst_20 = arith.constant 3.906250e-03 : f32
      %22 = vector.broadcast %cst_20 : f32 to vector<1x1x128xf32>
      %23 = arith.mulf %21, %22 : vector<1x1x128xf32>
      %c0_21 = arith.constant 0 : index
      %c0_22 = arith.constant 0 : index
      %c0_23 = arith.constant 0 : index
      %24 = vector.load %arg5[%c0_21, %c0_22, %c0_23] : memref<1x1x128xf32, #tpu.memory_space<vmem>>, vector<1x1x128xf32>
      tpu.vector_store %arg5[%c0_21, %c0_22, %c0_23], %23 {strides = array<i32>} : memref<1x1x128xf32, #tpu.memory_space<vmem>>, vector<1x1x128xf32>,
    } else {
    }
    return
  }
  func.func @transform_0(%arg0: i32, %arg1: i32) -> (i32, i32, i32) {
    %c0_i32 = arith.constant 0 : i32
    %c0_i32_0 = arith.constant 0 : i32
    return %arg0, %arg1, %c0_i32 : i32, i32, i32
  }
  func.func @transform_1(%arg0: i32, %arg1: i32) -> (i32, i32) {
    %c0_i32 = arith.constant 0 : i32
    %c0_i32_0 = arith.constant 0 : i32
    %c0_i32_1 = arith.constant 0 : i32
    return %c0_i32, %c0_i32_0 : i32, i32
  }
  func.func @transform_2(%arg0: i32, %arg1: i32) -> (i32, i32) {
    %c0_i32 = arith.constant 0 : i32
    %c0_i32_0 = arith.constant 0 : i32
    %c0_i32_1 = arith.constant 0 : i32
    return %c0_i32, %c0_i32_0 : i32, i32
  }
  func.func @transform_3(%arg0: i32, %arg1: i32) -> (i32, i32, i32) {
    %c0_i32 = arith.constant 0 : i32
    %c0_i32_0 = arith.constant 0 : i32
    %c0_i32_1 = arith.constant 0 : i32
    return %arg0, %c0_i32, %c0_i32_0 : i32, i32, i32
  }
}

</mosaic_0001>

<llo_original>
// kernel: tpu_custom_call.1
$region0: #{tpu_custom_call.1}
  #allocation0 [shape = 'u32[]', space=smem, size = 0x4, offset = 0x4, fixed_abs, tag = 'smem constant byte address 0x4 - core index']
  #allocation1 [shape = 'u32[144,128]{1,0:T(1,128)}', space=vmem, size = 0x12000, scoped, tag = 'internal scratch']
  %s0 = inlined_call_operand.hbm [shape: bf16[2,256,128], index: 0, kind: input, shape index: {}]
  %s1 = inlined_call_operand.hbm [shape: bf16[128,128], index: 1, kind: input, shape index: {}]
  %s2 = inlined_call_operand.vmem [shape: f32[1,128], index: 2, kind: input, shape index: {}]
  %s3 = inlined_call_operand.hbm [shape: f32[2,1,128], index: 3, kind: output, shape index: {}]
  %s4 = sld [smem:[#allocation0]]
  $region61: #{tpu_custom_call.1} parent=0
    _
  %s6 = ssub.s32 1, %s4
  %s7 = scalar_select 0, %s6, %s4
  $region1: #{tpu_custom_call.1} parent=0
    #allocation2 [shape = 'u8[131072]{0}', space=vmem, size = 0x20000, scoped, tag = 'input window, operand 0']
    #allocation3 [shape = 's32[2]{0}', space=sflag, size = 0x8, scoped, tag = 'scoped memory for tpu_custom_call.1']
    #allocation4 [shape = 's32[2]{0}', space=sflag, size = 0x8, scoped, tag = 'scoped memory for tpu_custom_call.1']
    #allocation5 [shape = 'u8[32768]{0}', space=vmem, size = 0x8000, scoped, tag = 'input window, operand 1, single buffered']
    #allocation6 [shape = 's32[1]{0}', space=sflag, size = 0x4, scoped, tag = 'scoped memory for tpu_custom_call.1']
    #allocation7 [shape = 'u8[1024]{0}', space=vmem, size = 0x400, scoped, tag = 'output window, operand 0']
    %8 = vsyncpa [#allocation3], 0
    %s9 = scalar_lea.sflag [#allocation3], 1
    %10 = vsyncpa %s9, 0
    %11 = vsyncpa [#allocation6], 0
    %12 = vsyncpa [#allocation4], 0
    %s13 = scalar_lea.sflag [#allocation4], 1
    %14 = vsyncpa %s13, 0
    loop: start=0, step=1, limit=4
    $region2: #{tpu_custom_call.1} parent=1 // loop_pre_header
      _
    $region3: #{tpu_custom_call.1} parent=1 // loop_header
      %s16 = sphi 0, %s20
      %p17 = scmp.ge.s32.totalorder %s16, 4
      %s23 = sphi 0, %s35
      %s24 = sphi 0, %s31
      %s25 = sphi 0, %s23
      %s26 = sphi 0, %s24
      %s27 = sphi 0, %s25
      %s28 = sphi 0, %s26
      %s40 = sphi 0, %s42
      %s43 = sphi 0, %s40
      %s44 = sphi 0, %s43
      %s60 = sphi 0, %s44
      %s64 = sphi 0, %s64
      %s66 = sphi 0, %s64
      %s67 = sphi 0, %s66
      %s81 = sphi 0, %s67
      %s85 = sphi 0, %s85
      %s87 = sphi 0, %s85
      %s88 = sphi 0, %s87
      %s102 = sphi 0, %s88
      %s108 = sphi 0, %s110
      %s111 = sphi 0, %s108
      %s112 = sphi 0, %s111
      %s128 = sphi 0, %s112
    $region4: #{tpu_custom_call.1} parent=1 // loop_header_branch
      %19 = sbr.rel (%p17) target = $region8
    $region5: #{tpu_custom_call.1} parent=1 // loop_body
      %s21 = ssub.s32 %s16, 1
      %s22 = ssub.s32 %s16, 2
      %s29 = sadd.s32 1, %s24
      %p30 = scmp.ge.s32.totalorder %s29, 1
      %s31 = scalar_select %p30, 0, %s29
      %s32 = sadd.s32 1, %s23
      %s33 = scalar_select %p30, %s32, %s23
      %p34 = scmp.ge.s32.totalorder %s33, 2
      %s35 = scalar_select %p34, 0, %s33
      %s36 = ssub.s32 %s23, %s35
      %s37 = ssub.s32 %s24, %s31
      %s38 = sor.u32 %s36, %s37
      %p39 = scmp.eq.s32.totalorder %s38, 0
      %s41 = sadd.s32 %s40, 1
      %s42 = scalar_select %p39, %s40, %s41
      %p45 = pneg %p39
      %p46 = scmp.eq.s32.totalorder %s16, 1
      %p47 = por %p45, %p46
      %p48 = scmp.ne.s32.totalorder %s40, %s43
      %p49 = scmp.eq.s32.totalorder %s16, 0
      %p50 = por %p48, %p49
      %p51 = scmp.ne.s32.totalorder %s40, %s43
      %p52 = scmp.eq.s32.totalorder %s21, 1
      %p53 = por %p51, %p52
      %p54 = scmp.ne.s32.totalorder %s43, %s44
      %p55 = scmp.eq.s32.totalorder %s21, 0
      %p56 = por %p54, %p55
      %p57 = scmp.ne.s32.totalorder %s43, %s44
      %p58 = scmp.eq.s32.totalorder %s22, 1
      %p59 = por %p57, %p58
      %p61 = scmp.ne.s32.totalorder %s44, %s60
      %p62 = scmp.eq.s32.totalorder %s22, 0
      %p63 = por %p61, %p62
      %s65 = sadd.s32 %s64, 1
      %p68 = scmp.eq.s32.totalorder %s16, 1
      %p69 = scmp.ne.s32.totalorder %s64, %s66
      %p70 = scmp.eq.s32.totalorder %s16, 0
      %p71 = por %p69, %p70
      %p72 = scmp.ne.s32.totalorder %s64, %s66
      %p73 = scmp.eq.s32.totalorder %s21, 1
      %p74 = por %p72, %p73
      %p75 = scmp.ne.s32.totalorder %s66, %s67
      %p76 = scmp.eq.s32.totalorder %s21, 0
      %p77 = por %p75, %p76
      %p78 = scmp.ne.s32.totalorder %s66, %s67
      %p79 = scmp.eq.s32.totalorder %s22, 1
      %p80 = por %p78, %p79
      %p82 = scmp.ne.s32.totalorder %s67, %s81
      %p83 = scmp.eq.s32.totalorder %s22, 0
      %p84 = por %p82, %p83
      %s86 = sadd.s32 %s85, 1
      %p89 = scmp.eq.s32.totalorder %s16, 1
      %p90 = scmp.ne.s32.totalorder %s85, %s87
      %p91 = scmp.eq.s32.totalorder %s16, 0
      %p92 = por %p90, %p91
      %p93 = scmp.ne.s32.totalorder %s85, %s87
      %p94 = scmp.eq.s32.totalorder %s21, 1
      %p95 = por %p93, %p94
      %p96 = scmp.ne.s32.totalorder %s87, %s88
      %p97 = scmp.eq.s32.totalorder %s21, 0
      %p98 = por %p96, %p97
      %p99 = scmp.ne.s32.totalorder %s87, %s88
      %p100 = scmp.eq.s32.totalorder %s22, 1
      %p101 = por %p99, %p100
      %p103 = scmp.ne.s32.totalorder %s88, %s102
      %p104 = scmp.eq.s32.totalorder %s22, 0
      %p105 = por %p103, %p104
      %s106 = ssub.s32 %s23, %s35
      %p107 = scmp.eq.s32.totalorder %s106, 0
      %s109 = sadd.s32 %s108, 1
      %s110 = scalar_select %p107, %s108, %s109
      %p113 = pneg %p107
      %p114 = scmp.eq.s32.totalorder %s16, 1
      %p115 = por %p113, %p114
      %p116 = scmp.ne.s32.totalorder %s108, %s111
      %p117 = scmp.eq.s32.totalorder %s16, 0
      %p118 = por %p116, %p117
      %p119 = scmp.ne.s32.totalorder %s108, %s111
      %p120 = scmp.eq.s32.totalorder %s21, 1
      %p121 = por %p119, %p120
      %p122 = scmp.ne.s32.totalorder %s111, %s112
      %p123 = scmp.eq.s32.totalorder %s21, 0
      %p124 = por %p122, %p123
      %p125 = scmp.ne.s32.totalorder %s111, %s112
      %p126 = scmp.eq.s32.totalorder %s22, 1
      %p127 = por %p125, %p126
      %p129 = scmp.ne.s32.totalorder %s112, %s128
      %p130 = scmp.eq.s32.totalorder %s22, 0
      %p131 = por %p129, %p130
      %p132 = scmp.le.s32.totalorder 1, %s16
      %p133 = scmp.lt.s32.totalorder %s16, 3
      %p134 = pnand %p132, %p133
      %p135 = pneg %p134
      // Predicated region
      $region9: #{tpu_custom_call.1} parent=5 // pred_check
        _
      $region10: #{tpu_custom_call.1} parent=5 // pred_check_branch
        %137 = sbr.rel (%p134) target = $region12
      $region11: #{tpu_custom_call.1} parent=5 // pred_region
        %s138 = ssub.s32 %s16, 1
        // Predicated region
        $region13: #{tpu_custom_call.1} parent=11 // pred_check
          %p139 = pneg %p77
        $region14: #{tpu_custom_call.1} parent=11 // pred_check_branch
          %141 = sbr.rel (%p139) target = $region16
        $region15: #{tpu_custom_call.1} parent=11 // pred_region
          %s143 = ssub.s32 1024, 1024
          %144 = vsyncadd [#allocation6], %s143
          %s145 = sshll.u32 [#allocation5], 4
          %s146 = int_to_ptr.vmem [resolvable:$true] %s145
          %151 = dma.hbm_to_vmem [thread:$0]  %s1, 1024, %s146, [#allocation6], 64, 64, 4
        $region16: #{tpu_custom_call.1} parent=11 // pred_fallthru
          _
        // Predicated region
        $region17: #{tpu_custom_call.1} parent=11 // pred_check
          %p152 = pneg %p98
        $region18: #{tpu_custom_call.1} parent=11 // pred_check_branch
          %154 = sbr.rel (%p152) target = $region20
        $region19: #{tpu_custom_call.1} parent=11 // pred_region
          _
        $region20: #{tpu_custom_call.1} parent=11 // pred_fallthru
          _
      $region12: #{tpu_custom_call.1} parent=5 // pred_fallthru
        _
      %p155 = scmp.lt.s32.totalorder %s16, 2
      // Predicated region
      $region21: #{tpu_custom_call.1} parent=5 // pred_check
        %p156 = pneg %p155
      $region22: #{tpu_custom_call.1} parent=5 // pred_check_branch
        %158 = sbr.rel (%p156) target = $region24
      $region23: #{tpu_custom_call.1} parent=5 // pred_region
        // Predicated region
        $region25: #{tpu_custom_call.1} parent=23 // pred_check
          %p159 = pneg %p50
        $region26: #{tpu_custom_call.1} parent=23 // pred_check_branch
          %161 = sbr.rel (%p159) target = $region28
        $region27: #{tpu_custom_call.1} parent=23 // pred_region
          %s162 = sand.u32 %s40, 1
          %s163 = scalar_lea.sflag [#allocation3], %s162
          %s164 = sand.u32 %s40, 1
          %s165 = smul.addr %s164, 128
          %s166 = scalar_lea.vmem [#allocation2], %s165
          %s167 = smul.u32 32, %s24
          %s169 = ssub.s32 2048, 2048
          %170 = vsyncadd %s163, %s169
          %s171 = smul.addr %s23, 32
          %s172 = sadd.s32 %s167, %s171
          %s173 = smul.addr %s172, 64
          %s174 = scalar_lea.hbm %s0, %s173
          %s175 = sshll.u32 %s166, 4
          %s176 = int_to_ptr.vmem [resolvable:$true] %s175
          %181 = dma.hbm_to_vmem [thread:$0]  %s174, 2048, %s176, %s163, 64, 64, 4
        $region28: #{tpu_custom_call.1} parent=23 // pred_fallthru
          _
      $region24: #{tpu_custom_call.1} parent=5 // pred_fallthru
        _
      %p182 = scmp.le.s32.totalorder 1, %s16
      %p183 = scmp.lt.s32.totalorder %s16, 3
      %p184 = pnand %p182, %p183
      %p185 = pneg %p184
      // Predicated region
      $region29: #{tpu_custom_call.1} parent=5 // pred_check
        _
      $region30: #{tpu_custom_call.1} parent=5 // pred_check_branch
        %187 = sbr.rel (%p184) target = $region32
      $region31: #{tpu_custom_call.1} parent=5 // pred_region
        %s188 = ssub.s32 %s16, 1
        %s189 = sand.u32 %s43, 1
        %s190 = scalar_lea.sflag [#allocation3], %s189
        %s191 = sand.u32 %s43, 1
        %s192 = smul.addr %s191, 128
        %s193 = scalar_lea.vmem [#allocation2], %s192
        // Predicated region
        $region33: #{tpu_custom_call.1} parent=31 // pred_check
          %p194 = pneg %p56
        $region34: #{tpu_custom_call.1} parent=31 // pred_check_branch
          %196 = sbr.rel (%p194) target = $region36
        $region35: #{tpu_custom_call.1} parent=31 // pred_region
          %197 = dma.done %s190, 2048
        $region36: #{tpu_custom_call.1} parent=31 // pred_fallthru
          _
        // Predicated region
        $region37: #{tpu_custom_call.1} parent=31 // pred_check
          %p198 = pneg %p77
        $region38: #{tpu_custom_call.1} parent=31 // pred_check_branch
          %200 = sbr.rel (%p198) target = $region40
        $region39: #{tpu_custom_call.1} parent=31 // pred_region
          %201 = dma.done [#allocation6], 1024
        $region40: #{tpu_custom_call.1} parent=31 // pred_fallthru
          _
        %s202 = sand.u32 %s43, 1
        %s203 = scalar_lea.sflag [#allocation3], %s202
        %s204 = sand.u32 %s43, 1
        %s205 = smul.addr %s204, 128
        %s206 = scalar_lea.vmem [#allocation2], %s205
        %p207 = pneg %p56
        %p208 = pneg %p53
        %p209 = pneg %p77
        %p210 = pneg %p74
        %p211 = pneg %p98
        %p212 = pneg %p95
        %p213 = pneg %p124
        %p214 = pneg %p121
        %s215 = sand.u32 %s111, 1
        %s216 = scalar_lea.sflag [#allocation4], %s215
        %s217 = sand.u32 %s111, 1
        %s218 = scalar_lea.vmem [#allocation7], %s217
        %s219 = smul.u32 32, %s26
        %p221 = scmp.eq.s32.totalorder %s26, 0
        // Predicated region
        $region41: #{tpu_custom_call.1} parent=31 // pred_check
          %p222 = pneg %p221
        $region42: #{tpu_custom_call.1} parent=31 // pred_check_branch
          %224 = sbr.rel (%p222) target = $region44
        $region43: #{tpu_custom_call.1} parent=31 // pred_region
          %225 = vst [vmem:[%s218] sm:$0x1] 0.0
        $region44: #{tpu_custom_call.1} parent=31 // pred_fallthru
          _
        %v226 = vld [vmem:[%s193] sm:$0xf]
        %v227 = vld [vmem:[%s193 + $0x4] sm:$0xf]
        %v228 = vld [vmem:[%s193 + $0x8] sm:$0xf]
        %v229 = vld [vmem:[%s193 + $0xc] sm:$0xf]
        %v230 = vld [vmem:[%s193 + $0x10] sm:$0xf]
        %v231 = vld [vmem:[%s193 + $0x14] sm:$0xf]
        %v232 = vld [vmem:[%s193 + $0x18] sm:$0xf]
        %v233 = vld [vmem:[%s193 + $0x1c] sm:$0xf]
        %v234 = vld [vmem:[%s193 + $0x20] sm:$0xf]
        %v235 = vld [vmem:[%s193 + $0x24] sm:$0xf]
        %v236 = vld [vmem:[%s193 + $0x28] sm:$0xf]
        %v237 = vld [vmem:[%s193 + $0x2c] sm:$0xf]
        %v238 = vld [vmem:[%s193 + $0x30] sm:$0xf]
        %v239 = vld [vmem:[%s193 + $0x34] sm:$0xf]
        %v240 = vld [vmem:[%s193 + $0x38] sm:$0xf]
        %v241 = vld [vmem:[%s193 + $0x3c] sm:$0xf]
        %v242 = vld [vmem:[%s193 + $0x40] sm:$0xf]
        %v243 = vld [vmem:[%s193 + $0x44] sm:$0xf]
        %v244 = vld [vmem:[%s193 + $0x48] sm:$0xf]
        %v245 = vld [vmem:[%s193 + $0x4c] sm:$0xf]
        %v246 = vld [vmem:[%s193 + $0x50] sm:$0xf]
        %v247 = vld [vmem:[%s193 + $0x54] sm:$0xf]
        %v248 = vld [vmem:[%s193 + $0x58] sm:$0xf]
        %v249 = vld [vmem:[%s193 + $0x5c] sm:$0xf]
        %v250 = vld [vmem:[%s193 + $0x60] sm:$0xf]
        %v251 = vld [vmem:[%s193 + $0x64] sm:$0xf]
        %v252 = vld [vmem:[%s193 + $0x68] sm:$0xf]
        %v253 = vld [vmem:[%s193 + $0x6c] sm:$0xf]
        %v254 = vld [vmem:[%s193 + $0x70] sm:$0xf]
        %v255 = vld [vmem:[%s193 + $0x74] sm:$0xf]
        %v256 = vld [vmem:[%s193 + $0x78] sm:$0xf]
        %v257 = vld [vmem:[%s193 + $0x7c] sm:$0xf]
        %v258 = vld [vmem:[#allocation5] sm:$0xf]
        %v259 = vld [vmem:[#allocation5 + $0x4] sm:$0xf]
        %v260 = vld [vmem:[#allocation5 + $0x8] sm:$0xf]
        %v261 = vld [vmem:[#allocation5 + $0xc] sm:$0xf]
        %v262 = vld [vmem:[#allocation5 + $0x10] sm:$0xf]
        %v263 = vld [vmem:[#allocation5 + $0x14] sm:$0xf]
        %v264 = vld [vmem:[#allocation5 + $0x18] sm:$0xf]
        %v265 = vld [vmem:[#allocation5 + $0x1c] sm:$0xf]
        %v266 = vld [vmem:[#allocation5 + $0x20] sm:$0xf]
        %v267 = vld [vmem:[#allocation5 + $0x24] sm:$0xf]
        %v268 = vld [vmem:[#allocation5 + $0x28] sm:$0xf]
        %v269 = vld [vmem:[#allocation5 + $0x2c] sm:$0xf]
        %v270 = vld [vmem:[#allocation5 + $0x30] sm:$0xf]
        %v271 = vld [vmem:[#allocation5 + $0x34] sm:$0xf]
        %v272 = vld [vmem:[#allocation5 + $0x38] sm:$0xf]
        %v273 = vld [vmem:[#allocation5 + $0x3c] sm:$0xf]
        %v274 = vld [vmem:[%s2] sm:$0x1]
        %v276 = vlaneseq
        %v277 = vshrl.u32 %v276, 7
        %v278 = vsub.s32 0, %v277
        %v279 = vrot.slane %v274, %v278
        %v313 = vunpack.c.l.b16 %v226
        %v314 = vunpack.c.l.b16 %v227
        %v315 = vunpack.c.l.b16 %v228
        %v316 = vunpack.c.l.b16 %v229
        %v317 = vunpack.c.l.b16 %v230
        %v318 = vunpack.c.l.b16 %v231
        %v319 = vunpack.c.l.b16 %v232
        %v320 = vunpack.c.l.b16 %v233
        %v321 = vunpack.c.l.b16 %v234
        %v322 = vunpack.c.l.b16 %v235
        %v323 = vunpack.c.l.b16 %v236
        %v324 = vunpack.c.l.b16 %v237
        %v325 = vunpack.c.l.b16 %v238
        %v326 = vunpack.c.l.b16 %v239
        %v327 = vunpack.c.l.b16 %v240
        %v328 = vunpack.c.l.b16 %v241
        %v329 = vunpack.c.l.b16 %v242
        %v330 = vunpack.c.l.b16 %v243
        %v331 = vunpack.c.l.b16 %v244
        %v332 = vunpack.c.l.b16 %v245
        %v333 = vunpack.c.l.b16 %v246
        %v334 = vunpack.c.l.b16 %v247
        %v335 = vunpack.c.l.b16 %v248
        %v336 = vunpack.c.l.b16 %v249
        %v337 = vunpack.c.l.b16 %v250
        %v338 = vunpack.c.l.b16 %v251
        %v339 = vunpack.c.l.b16 %v252
        %v340 = vunpack.c.l.b16 %v253
        %v341 = vunpack.c.l.b16 %v254
        %v342 = vunpack.c.l.b16 %v255
        %v343 = vunpack.c.l.b16 %v256
        %v344 = vunpack.c.l.b16 %v257
        %v345 = vpack.c.b16 %v314, %v313
        %v346 = vpack.c.b16 %v316, %v315
        %v347 = vpack.c.b16 %v318, %v317
        %v348 = vpack.c.b16 %v320, %v319
        %v349 = vpack.c.b16 %v322, %v321
        %v350 = vpack.c.b16 %v324, %v323
        %v351 = vpack.c.b16 %v326, %v325
        %v352 = vpack.c.b16 %v328, %v327
        %v353 = vpack.c.b16 %v330, %v329
        %v354 = vpack.c.b16 %v332, %v331
        %v355 = vpack.c.b16 %v334, %v333
        %v356 = vpack.c.b16 %v336, %v335
        %v357 = vpack.c.b16 %v338, %v337
        %v358 = vpack.c.b16 %v340, %v339
        %v359 = vpack.c.b16 %v342, %v341
        %v360 = vpack.c.b16 %v344, %v343
        %v393 = vunpack.c.l.b16 %v258
        %v394 = vunpack.c.l.b16 %v259
        %v395 = vunpack.c.l.b16 %v260
        %v396 = vunpack.c.l.b16 %v261
        %v397 = vunpack.c.l.b16 %v262
        %v398 = vunpack.c.l.b16 %v263
        %v399 = vunpack.c.l.b16 %v264
        %v400 = vunpack.c.l.b16 %v265
        %v401 = vunpack.c.l.b16 %v266
        %v402 = vunpack.c.l.b16 %v267
        %v403 = vunpack.c.l.b16 %v268
        %v404 = vunpack.c.l.b16 %v269
        %v405 = vunpack.c.l.b16 %v270
        %v406 = vunpack.c.l.b16 %v271
        %v407 = vunpack.c.l.b16 %v272
        %v408 = vunpack.c.l.b16 %v273
        %v409 = vpack.c.b16 %v394, %v393
        %v410 = vpack.c.b16 %v396, %v395
        %v411 = vpack.c.b16 %v398, %v397
        %v412 = vpack.c.b16 %v400, %v399
        %v413 = vpack.c.b16 %v402, %v401
        %v414 = vpack.c.b16 %v404, %v403
        %v415 = vpack.c.b16 %v406, %v405
        %v416 = vpack.c.b16 %v408, %v407
        %425 = vmatprep.subr.bf16.mxu0 0
        %426 = vmatpush1.bf16.msra.mxu0 %v416
        %427 = vmatprep.subr.bf16.mxu0 0
        %428 = vmatpush1.bf16.msra.mxu0 %v415
        %429 = vmatprep.subr.bf16.mxu0 0
        %430 = vmatpush1.bf16.msra.mxu0 %v414
        %431 = vmatprep.subr.bf16.mxu0 0
        %432 = vmatpush1.bf16.msra.mxu0 %v413
        %433 = vmatprep.subr.bf16.mxu0 0
        %434 = vmatpush1.bf16.msra.mxu0 %v412
        %435 = vmatprep.subr.bf16.mxu0 0
        %436 = vmatpush1.bf16.msra.mxu0 %v411
        %437 = vmatprep.subr.bf16.mxu0 0
        %438 = vmatpush1.bf16.msra.mxu0 %v410
        %439 = vmatprep.subr.bf16.mxu0 0
        %440 = vmatpush1.bf16.msra.mxu0 %v409
        %441 = vmatprep.subr.bf16.mxu0 0
        %442 = vmatpush2.bf16.msra.mxu0 0
        %443 = vmatprep.subr.bf16.mxu0 0
        %444 = vmatpush2.bf16.msra.mxu0 0
        %445 = vmatprep.subr.bf16.mxu0 0
        %446 = vmatpush2.bf16.msra.mxu0 0
        %447 = vmatprep.subr.bf16.mxu0 0
        %448 = vmatpush2.bf16.msra.mxu0 0
        %449 = vmatprep.subr.bf16.mxu0 0
        %450 = vmatpush2.bf16.msra.mxu0 0
        %451 = vmatprep.subr.bf16.mxu0 0
        %452 = vmatpush2.bf16.msra.mxu0 0
        %453 = vmatprep.subr.bf16.mxu0 0
        %454 = vmatpush2.bf16.msra.mxu0 0
        %455 = vmatprep.subr.bf16.mxu0 0
        %456 = vmatpush2.bf16.msra.mxu0 0
        %457 = vmatprep.mubr.bf16.mxu0 0
        %458 = vmatmul.mubr.bf16.gmra.mxu0 %v345
        %v459 = vpop.f32.mrf.mxu0
        %v460 = vadd.f32 %v279, %v459
        %v461 = vpop.f32.mrf.mxu0
        %v462 = vpop.f32.mrf.mxu0
        %v463 = vadd.f32 %v279, %v462
        %v464 = vpop.f32.mrf.mxu0
        %465 = vmatprep.mubr.bf16.mxu0 0
        %466 = vmatmul.mubr.bf16.gmra.mxu0 %v346
        %v467 = vpop.f32.mrf.mxu0
        %v468 = vadd.f32 %v279, %v467
        %v469 = vpop.f32.mrf.mxu0
        %v470 = vpop.f32.mrf.mxu0
        %v471 = vadd.f32 %v279, %v470
        %v472 = vpop.f32.mrf.mxu0
        %473 = vmatprep.mubr.bf16.mxu0 0
        %474 = vmatmul.mubr.bf16.gmra.mxu0 %v347
        %v475 = vpop.f32.mrf.mxu0
        %v476 = vadd.f32 %v279, %v475
        %v477 = vpop.f32.mrf.mxu0
        %v478 = vpop.f32.mrf.mxu0
        %v479 = vadd.f32 %v279, %v478
        %v480 = vpop.f32.mrf.mxu0
        %481 = vmatprep.mubr.bf16.mxu0 0
        %482 = vmatmul.mubr.bf16.gmra.mxu0 %v348
        %v483 = vpop.f32.mrf.mxu0
        %v484 = vadd.f32 %v279, %v483
        %v485 = vpop.f32.mrf.mxu0
        %v486 = vpop.f32.mrf.mxu0
        %v487 = vadd.f32 %v279, %v486
        %v488 = vpop.f32.mrf.mxu0
        %489 = vmatprep.mubr.bf16.mxu0 0
        %490 = vmatmul.mubr.bf16.gmra.mxu0 %v349
        %v491 = vpop.f32.mrf.mxu0
        %v492 = vadd.f32 %v279, %v491
        %v493 = vpop.f32.mrf.mxu0
        %v494 = vpop.f32.mrf.mxu0
        %v495 = vadd.f32 %v279, %v494
        %v496 = vpop.f32.mrf.mxu0
        %497 = vmatprep.mubr.bf16.mxu0 0
        %498 = vmatmul.mubr.bf16.gmra.mxu0 %v350
        %v499 = vpop.f32.mrf.mxu0
        %v500 = vadd.f32 %v279, %v499
        %v501 = vpop.f32.mrf.mxu0
        %v502 = vpop.f32.mrf.mxu0
        %v503 = vadd.f32 %v279, %v502
        %v504 = vpop.f32.mrf.mxu0
        %505 = vmatprep.mubr.bf16.mxu0 0
        %506 = vmatmul.mubr.bf16.gmra.mxu0 %v351
        %v507 = vpop.f32.mrf.mxu0
        %v508 = vadd.f32 %v279, %v507
        %v509 = vpop.f32.mrf.mxu0
        %v510 = vpop.f32.mrf.mxu0
        %v511 = vadd.f32 %v279, %v510
        %v512 = vpop.f32.mrf.mxu0
        %513 = vmatprep.mubr.bf16.mxu0 0
        %514 = vmatmul.mubr.bf16.gmra.mxu0 %v352
        %v515 = vpop.f32.mrf.mxu0
        %v516 = vadd.f32 %v279, %v515
        %v517 = vpop.f32.mrf.mxu0
        %v518 = vpop.f32.mrf.mxu0
        %v519 = vadd.f32 %v279, %v518
        %v520 = vpop.f32.mrf.mxu0
        %521 = vmatprep.mubr.bf16.mxu0 0
        %522 = vmatmul.mubr.bf16.gmra.mxu0 %v353
        %v523 = vpop.f32.mrf.mxu0
        %v524 = vadd.f32 %v279, %v523
        %v525 = vpop.f32.mrf.mxu0
        %v526 = vpop.f32.mrf.mxu0
        %v527 = vadd.f32 %v279, %v526
        %v528 = vpop.f32.mrf.mxu0
        %529 = vmatprep.mubr.bf16.mxu0 0
        %530 = vmatmul.mubr.bf16.gmra.mxu0 %v354
        %v531 = vpop.f32.mrf.mxu0
        %v532 = vadd.f32 %v279, %v531
        %v533 = vpop.f32.mrf.mxu0
        %v534 = vpop.f32.mrf.mxu0
        %v535 = vadd.f32 %v279, %v534
        %v536 = vpop.f32.mrf.mxu0
        %537 = vmatprep.mubr.bf16.mxu0 0
        %538 = vmatmul.mubr.bf16.gmra.mxu0 %v355
        %v539 = vpop.f32.mrf.mxu0
        %v540 = vadd.f32 %v279, %v539
        %v541 = vpop.f32.mrf.mxu0
        %v542 = vpop.f32.mrf.mxu0
        %v543 = vadd.f32 %v279, %v542
        %v544 = vpop.f32.mrf.mxu0
        %545 = vmatprep.mubr.bf16.mxu0 0
        %546 = vmatmul.mubr.bf16.gmra.mxu0 %v356
        %v547 = vpop.f32.mrf.mxu0
        %v548 = vadd.f32 %v279, %v547
        %v549 = vpop.f32.mrf.mxu0
        %v550 = vpop.f32.mrf.mxu0
        %v551 = vadd.f32 %v279, %v550
        %v552 = vpop.f32.mrf.mxu0
        %553 = vmatprep.mubr.bf16.mxu0 0
        %554 = vmatmul.mubr.bf16.gmra.mxu0 %v357
        %v555 = vpop.f32.mrf.mxu0
        %v556 = vadd.f32 %v279, %v555
        %v557 = vpop.f32.mrf.mxu0
        %v558 = vpop.f32.mrf.mxu0
        %v559 = vadd.f32 %v279, %v558
        %v560 = vpop.f32.mrf.mxu0
        %561 = vmatprep.mubr.bf16.mxu0 0
        %562 = vmatmul.mubr.bf16.gmra.mxu0 %v358
        %v563 = vpop.f32.mrf.mxu0
        %v564 = vadd.f32 %v279, %v563
        %v565 = vpop.f32.mrf.mxu0
        %v566 = vpop.f32.mrf.mxu0
        %v567 = vadd.f32 %v279, %v566
        %v568 = vpop.f32.mrf.mxu0
        %569 = vmatprep.mubr.bf16.mxu0 0
        %570 = vmatmul.mubr.bf16.gmra.mxu0 %v359
        %v571 = vpop.f32.mrf.mxu0
        %v572 = vadd.f32 %v279, %v571
        %v573 = vpop.f32.mrf.mxu0
        %v574 = vpop.f32.mrf.mxu0
        %v575 = vadd.f32 %v279, %v574
        %v576 = vpop.f32.mrf.mxu0
        %577 = vmatprep.mubr.bf16.mxu0 0
        %578 = vmatmul.mubr.bf16.gmra.mxu0 %v360
        %v579 = vpop.f32.mrf.mxu0
        %v580 = vadd.f32 %v279, %v579
        %v581 = vpop.f32.mrf.mxu0
        %v582 = vpop.f32.mrf.mxu0
        %v583 = vadd.f32 %v279, %v582
        %v584 = vpop.f32.mrf.mxu0
        %585 = vdwg.mxu0
        %v586 = vmax.f32 %v460, 0.0
        %v587 = vmax.f32 %v463, 0.0
        %v588 = vmax.f32 %v468, 0.0
        %v589 = vmax.f32 %v471, 0.0
        %v590 = vmax.f32 %v476, 0.0
        %v591 = vmax.f32 %v479, 0.0
        %v592 = vmax.f32 %v484, 0.0
        %v593 = vmax.f32 %v487, 0.0
        %v594 = vmax.f32 %v492, 0.0
        %v595 = vmax.f32 %v495, 0.0
        %v596 = vmax.f32 %v500, 0.0
        %v597 = vmax.f32 %v503, 0.0
        %v598 = vmax.f32 %v508, 0.0
        %v599 = vmax.f32 %v511, 0.0
        %v600 = vmax.f32 %v516, 0.0
        %v601 = vmax.f32 %v519, 0.0
        %v602 = vmax.f32 %v524, 0.0
        %v603 = vmax.f32 %v527, 0.0
        %v604 = vmax.f32 %v532, 0.0
        %v605 = vmax.f32 %v535, 0.0
        %v606 = vmax.f32 %v540, 0.0
        %v607 = vmax.f32 %v543, 0.0
        %v608 = vmax.f32 %v548, 0.0
        %v609 = vmax.f32 %v551, 0.0
        %v610 = vmax.f32 %v556, 0.0
        %v611 = vmax.f32 %v559, 0.0
        %v612 = vmax.f32 %v564, 0.0
        %v613 = vmax.f32 %v567, 0.0
        %v614 = vmax.f32 %v572, 0.0
        %v615 = vmax.f32 %v575, 0.0
        %v616 = vmax.f32 %v580, 0.0
        %v617 = vmax.f32 %v583, 0.0
        %v618 = vld [vmem:[%s218] sm:$0x1]
        %v619 = vadd.f32 %v586, %v587
        %v620 = vadd.f32 %v619, %v588
        %v621 = vadd.f32 %v620, %v589
        %v622 = vadd.f32 %v621, %v590
        %v623 = vadd.f32 %v622, %v591
        %v624 = vadd.f32 %v623, %v592
        %v625 = vadd.f32 %v624, %v593
        %v626 = vadd.f32 %v625, %v594
        %v627 = vadd.f32 %v626, %v595
        %v628 = vadd.f32 %v627, %v596
        %v629 = vadd.f32 %v628, %v597
        %v630 = vadd.f32 %v629, %v598
        %v631 = vadd.f32 %v630, %v599
        %v632 = vadd.f32 %v631, %v600
        %v633 = vadd.f32 %v632, %v601
        %v634 = vadd.f32 %v633, %v602
        %v635 = vadd.f32 %v634, %v603
        %v636 = vadd.f32 %v635, %v604
        %v637 = vadd.f32 %v636, %v605
        %v638 = vadd.f32 %v637, %v606
        %v639 = vadd.f32 %v638, %v607
        %v640 = vadd.f32 %v639, %v608
        %v641 = vadd.f32 %v640, %v609
        %v642 = vadd.f32 %v641, %v610
        %v643 = vadd.f32 %v642, %v611
        %v644 = vadd.f32 %v643, %v612
        %v645 = vadd.f32 %v644, %v613
        %v646 = vadd.f32 %v645, %v614
        %v647 = vadd.f32 %v646, %v615
        %v648 = vadd.f32 %v647, %v616
        %v649 = vadd.f32 %v648, %v617
        %v650 = vrot.slane %v649, 4
        %v651 = vadd.f32 %v649, %v650
        %v652 = vrot.slane %v651, 2
        %v653 = vadd.f32 %v651, %v652
        %v654 = vrot.slane %v653, 1
        %v655 = vadd.f32 %v653, %v654
        %v656 = vadd.f32 %v618, %v655
        %657 = vst [vmem:[%s218] sm:$0x1] %v656
        // Predicated region
        $region45: #{tpu_custom_call.1} parent=31 // pred_check
          %p658 = pneg %p221
        $region46: #{tpu_custom_call.1} parent=31 // pred_check_branch
          %660 = sbr.rel (%p658) target = $region48
        $region47: #{tpu_custom_call.1} parent=31 // pred_region
          %v661 = vld [vmem:[%s218] sm:$0x1]
          %v662 = vmul.f32 %v661, 0.00390625
          %663 = vst [vmem:[%s218] sm:$0x1] %v662
        $region48: #{tpu_custom_call.1} parent=31 // pred_fallthru
          _
        %s664 = sand.u32 %s111, 1
        %s665 = scalar_lea.sflag [#allocation4], %s664
        %s666 = sand.u32 %s111, 1
        %s667 = scalar_lea.vmem [#allocation7], %s666
        // Predicated region
        $region49: #{tpu_custom_call.1} parent=31 // pred_check
          %p668 = pneg %p121
        $region50: #{tpu_custom_call.1} parent=31 // pred_check_branch
          %670 = sbr.rel (%p668) target = $region52
        $region51: #{tpu_custom_call.1} parent=31 // pred_region
          %s672 = ssub.s32 16, 16
          %673 = vsyncadd %s665, %s672
          %s674 = smul.addr %s25, 16
          %s675 = scalar_lea.hbm %s3, %s674
          %s677 = sshll.u32 %s667, 4
          %s678 = int_to_ptr.vmem [resolvable:$true] %s677
          %680 = dma.vmem_to_hbm [thread:$0]  %s678, 16, %s675, %s665
        $region52: #{tpu_custom_call.1} parent=31 // pred_fallthru
          _
      $region32: #{tpu_custom_call.1} parent=5 // pred_fallthru
        _
      %p681 = scmp.le.s32.totalorder 2, %s16
      // Predicated region
      $region53: #{tpu_custom_call.1} parent=5 // pred_check
        %p682 = pneg %p681
      $region54: #{tpu_custom_call.1} parent=5 // pred_check_branch
        %684 = sbr.rel (%p682) target = $region56
      $region55: #{tpu_custom_call.1} parent=5 // pred_region
        %s685 = ssub.s32 %s16, 2
        // Predicated region
        $region57: #{tpu_custom_call.1} parent=55 // pred_check
          %p686 = pneg %p127
        $region58: #{tpu_custom_call.1} parent=55 // pred_check_branch
          %688 = sbr.rel (%p686) target = $region60
        $region59: #{tpu_custom_call.1} parent=55 // pred_region
          %s689 = sand.u32 %s112, 1
          %s690 = scalar_lea.sflag [#allocation4], %s689
          %s691 = sand.u32 %s112, 1
          %s692 = scalar_lea.vmem [#allocation7], %s691
          %693 = dma.done %s690, 16
        $region60: #{tpu_custom_call.1} parent=55 // pred_fallthru
          _
      $region56: #{tpu_custom_call.1} parent=5 // pred_fallthru
        _
    $region6: #{tpu_custom_call.1} parent=1 // loop_footer
      %s20 = sadd.s32 1, %s16
    $region7: #{tpu_custom_call.1} parent=1 // loop_footer_branch
      %15 = sbr.rel target = $region3
    $region8: #{tpu_custom_call.1} parent=1 // loop_exit
      _
    %694 = vsyncpa [#allocation3], 1
    %s695 = scalar_lea.sflag [#allocation3], 1
    %696 = vsyncpa %s695, 1
    %697 = vsyncpa [#allocation6], 1
    %698 = vsyncpa [#allocation4], 1
    %s699 = scalar_lea.sflag [#allocation4], 1
    %700 = vsyncpa %s699, 1

</llo_original>
